<compile_context>
chip_gen: v7x
topology: tpu7x:2x2x1
jax: 0.10.0
libtpu: 0.0.40
codegen_flags: <defaults>
</compile_context>

<pallas_src>
import functools

import jax
import jax.numpy as jnp
import numpy as np
from jax import lax
from jax.experimental import pallas as pl
from jax.experimental.pallas import tpu as pltpu


def _round_up(x, m):
    return (x + m - 1) // m * m


def fm_kernel(idx_ref, rhs_ref, bias_ref, out_ref, *, d_pad):
    """One batch tile of the FM forward.

    idx_ref  : (F, TB)   int32     ids (already offset into the shared vocab)
    rhs_ref  : (Wp, Vp)  f32/bf16  fused table rows = [E^T ; (E*E)^T ; w^T ; zero pad]
    bias_ref : (1,)      f32       in SMEM
    out_ref  : (1, TB)   f32       lane-dense output row
    """
    num_fields, tb = idx_ref.shape
    _, vocab_pad = rhs_ref.shape
    cdt = rhs_ref.dtype

    # Transposed count matrix: C^T[v, b] = #fields of row b whose id == v.
    v_iota = lax.broadcasted_iota(jnp.int32, (vocab_pad, tb), 0)
    c_t = jnp.zeros((vocab_pad, tb), cdt)
    for f in range(num_fields):                        # tiny static loop over fields
        c_t = c_t + (idx_ref[f:f + 1, :] == v_iota).astype(cdt)

    # Single fused MXU matmul replaces {C@E, C@(E*E), C@w}.
    res = jnp.dot(rhs_ref[...], c_t, preferred_element_type=jnp.float32)   # (Wp, TB)

    sum_e = res[:d_pad, :]                       # sum_f E[x[b,f], :]       (Dp, TB)
    sum_e2 = res[d_pad:2 * d_pad, :]             # sum_f E[x[b,f], :]**2    (Dp, TB)
    y_lin = res[2 * d_pad:2 * d_pad + 1, :]      # sum_f w[x[b,f]]          (1,  TB)

    inter = 0.5 * jnp.sum(sum_e * sum_e - sum_e2, axis=0, keepdims=True)    # (1, TB)
    out_ref[...] = y_lin + inter + bias_ref[0]


@functools.partial(jax.jit, static_argnames=("d_pad", "tile_b"))
def fm_forward(x_idx, rhs, bias, *, d_pad, tile_b=128):
    """x_idx: (B, F) int32 ids with field offsets already added. Returns (B,) f32."""
    batch, num_fields = x_idx.shape
    w_rows, vocab_pad = rhs.shape

    batch_pad = _round_up(batch, tile_b)
    if batch_pad != batch:
        # id 0 is a valid row -> padded rows compute harmless garbage, sliced away below.
        x_idx = jnp.pad(x_idx, ((0, batch_pad - batch), (0, 0)))
    x_t = x_idx.T                                   # (F, Bp): batch on the lane axis

    out = pl.pallas_call(
        functools.partial(fm_kernel, d_pad=d_pad),
        out_shape=jax.ShapeDtypeStruct((1, batch_pad), jnp.float32),
        grid_spec=pltpu.PrefetchScalarGridSpec(
            num_scalar_prefetch=0,
            grid=(batch_pad // tile_b,),
            in_specs=[
                pl.BlockSpec((num_fields, tile_b), lambda i: (0, i)),
                # Fused table: grid-invariant index_map -> DMA'd once, resident in VMEM.
                pl.BlockSpec((w_rows, vocab_pad), lambda i: (0, 0)),
                pl.BlockSpec(memory_space=pltpu.MemorySpace.SMEM),
            ],
            out_specs=pl.BlockSpec((1, tile_b), lambda i: (0, i)),   # lane-dense output
        ),
        compiler_params=pltpu.CompilerParams(
            dimension_semantics=("parallel",),
            vmem_limit_bytes=32 * 1024 * 1024,
        ),
    )(x_t, rhs, bias)
    return out[0, :batch]


def make_params(field_dims, embed_dim, key):
    vocab = int(sum(field_dims))
    k_emb, k_fc = jax.random.split(key)

    # Xavier-uniform init matching torch.nn.init.xavier_uniform_.
    lim_e = float(np.sqrt(6.0 / (vocab + embed_dim)))
    emb = jax.random.uniform(k_emb, (vocab, embed_dim), jnp.float32, -lim_e, lim_e)
    lim_w = float(np.sqrt(6.0 / (vocab + 1)))
    w = jax.random.uniform(k_fc, (vocab, 1), jnp.float32, -lim_w, lim_w)
    bias = jnp.zeros((1,), jnp.float32)

    offsets = jnp.asarray(
        np.array((0, *np.cumsum(field_dims)[:-1]), dtype=np.int32))
    return emb, w, bias, offsets


def build_fused_rhs(emb, w, *, dtype=jnp.float32):
    """Pre-build RHS^T = [E^T ; (E*E)^T ; w^T] padded to (mult 8, mult 128)."""
    vocab, d = emb.shape
    d_pad = _round_up(d, 128)          # lane-pad embed dim
    v_pad = _round_up(vocab, 128)      # vocab is the matmul K dim -> pad to 128
    w_rows = _round_up(2 * d_pad + 1, 8)

    emb_np = np.asarray(emb, np.float32)
    rhs = np.zeros((w_rows, v_pad), np.float32)
    rhs[:d, :vocab] = emb_np.T
    rhs[d_pad:d_pad + d, :vocab] = (emb_np ** 2).T     # E*E computed once, in f32
    rhs[2 * d_pad, :vocab] = np.asarray(w, np.float32)[:, 0]
    return jnp.asarray(rhs, dtype=dtype), d_pad


def reference_fm(x_idx, emb, w, bias):
    """Plain-JAX reference matching the PyTorch module semantics."""
    e = emb[x_idx]                                         # (B, F, D)
    y_lin = jnp.sum(w[x_idx][..., 0], axis=1) + bias[0]    # (B,)
    sq_of_sum = jnp.sum(e, axis=1) ** 2
    sum_of_sq = jnp.sum(e ** 2, axis=1)
    inter = 0.5 * jnp.sum(sq_of_sum - sum_of_sq, axis=1)
    return y_lin + inter


if __name__ == "__main__":
    field_dims = [3, 4, 5, 6]
    embed_dim = 16
    batch = 200            # not a multiple of tile_b -> exercises batch padding

    key = jax.random.PRNGKey(0)
    k_param, k_x = jax.random.split(key)
    emb, w, bias, offsets = make_params(field_dims, embed_dim, k_param)

    # Per-field categorical ids in [0, field_dims[f]).
    keys = jax.random.split(k_x, len(field_dims))
    cols = [jax.random.randint(keys[f], (batch,), 0, field_dims[f], jnp.int32)
            for f in range(len(field_dims))]
    x = jnp.stack(cols, axis=1)                  # (B, F) raw ids
    x_off = x + offsets[None, :]                 # shared-vocab ids
    # Guard: the count-matrix trick silently ignores out-of-range ids.
    assert int(jnp.max(x_off)) < int(sum(field_dims))

    y_ref = reference_fm(x_off, emb, w, bias)

    # f32 fused table: matches module semantics tightly.
    rhs_f32, d_pad = build_fused_rhs(emb, w, dtype=jnp.float32)
    y32 = jax.block_until_ready(
        fm_forward(x_off, rhs_f32, bias, d_pad=d_pad, tile_b=128))
    np.testing.assert_allclose(np.asarray(y32), np.asarray(y_ref), rtol=1e-4, atol=1e-4)

    # bf16 fused table + bf16 counts: single-pass MXU, f32 accumulation (reduced precision).
    rhs_bf16, _ = build_fused_rhs(emb, w, dtype=jnp.bfloat16)
    y16 = jax.block_until_ready(
        fm_forward(x_off, rhs_bf16, bias, d_pad=d_pad, tile_b=128))
    np.testing.assert_allclose(np.asarray(y16), np.asarray(y_ref), rtol=1e-1, atol=1e-1)

    print("KERNEL_OK")
</pallas_src>

<mosaic_0001>
module attributes {stable_mosaic.version = 11 : i64} {
  func.func @fm_kernel(%arg0: i32, %arg1: memref<4x128xi32, #tpu.memory_space<vmem>>, %arg2: memref<264x128xf32, #tpu.memory_space<vmem>>, %arg3: memref<1xf32, #tpu.memory_space<smem>>, %arg4: memref<1x128xf32, #tpu.memory_space<vmem>>) attributes {dimension_semantics = [#tpu.dimension_semantics<parallel>], iteration_bounds = array<i64: 2>, scalar_prefetch = 0 : i64, scratch_operands = 0 : i64, tpu.core_type = #tpu.core_type<tc>, window_params = [{transform_indices = @transform_0, window_bounds = array<i64: 4, 128>}, {pipeline_mode = #tpu.pipeline_mode<synchronous>, transform_indices = @transform_1, window_bounds = array<i64: 264, 128>}, {transform_indices = @transform_2, window_bounds = array<i64: 1>}, {transform_indices = @transform_3, window_bounds = array<i64: 1, 128>}]} {
    %0 = tpu.iota {dimensions = array<i32: 0>} : vector<128x128xi32>
    %cst = arith.constant 0.000000e+00 : f32
    %1 = vector.broadcast %cst : f32 to vector<128x128xf32>
    %c0 = arith.constant 0 : index
    %c0_0 = arith.constant 0 : index
    %2 = vector.load %arg1[%c0, %c0_0] : memref<4x128xi32, #tpu.memory_space<vmem>>, vector<1x128xi32>
    %3 = vector.broadcast %2 : vector<1x128xi32> to vector<128x128xi32>
    %4 = arith.cmpi eq, %3, %0 : vector<128x128xi32>
    %5 = arith.extui %4 : vector<128x128xi1> to vector<128x128xi32>
    %6 = arith.sitofp %5 : vector<128x128xi32> to vector<128x128xf32>
    %7 = arith.addf %1, %6 : vector<128x128xf32>
    %c1 = arith.constant 1 : index
    %c0_1 = arith.constant 0 : index
    %8 = vector.load %arg1[%c1, %c0_1] : memref<4x128xi32, #tpu.memory_space<vmem>>, vector<1x128xi32>
    %9 = vector.broadcast %8 : vector<1x128xi32> to vector<128x128xi32>
    %10 = arith.cmpi eq, %9, %0 : vector<128x128xi32>
    %11 = arith.extui %10 : vector<128x128xi1> to vector<128x128xi32>
    %12 = arith.sitofp %11 : vector<128x128xi32> to vector<128x128xf32>
    %13 = arith.addf %7, %12 : vector<128x128xf32>
    %c2 = arith.constant 2 : index
    %c0_2 = arith.constant 0 : index
    %14 = vector.load %arg1[%c2, %c0_2] : memref<4x128xi32, #tpu.memory_space<vmem>>, vector<1x128xi32>
    %15 = vector.broadcast %14 : vector<1x128xi32> to vector<128x128xi32>
    %16 = arith.cmpi eq, %15, %0 : vector<128x128xi32>
    %17 = arith.extui %16 : vector<128x128xi1> to vector<128x128xi32>
    %18 = arith.sitofp %17 : vector<128x128xi32> to vector<128x128xf32>
    %19 = arith.addf %13, %18 : vector<128x128xf32>
    %c3 = arith.constant 3 : index
    %c0_3 = arith.constant 0 : index
    %20 = vector.load %arg1[%c3, %c0_3] : memref<4x128xi32, #tpu.memory_space<vmem>>, vector<1x128xi32>
    %21 = vector.broadcast %20 : vector<1x128xi32> to vector<128x128xi32>
    %22 = arith.cmpi eq, %21, %0 : vector<128x128xi32>
    %23 = arith.extui %22 : vector<128x128xi1> to vector<128x128xi32>
    %24 = arith.sitofp %23 : vector<128x128xi32> to vector<128x128xf32>
    %25 = arith.addf %19, %24 : vector<128x128xf32>
    %c0_4 = arith.constant 0 : index
    %c0_5 = arith.constant 0 : index
    %26 = vector.load %arg2[%c0_4, %c0_5] : memref<264x128xf32, #tpu.memory_space<vmem>>, vector<264x128xf32>
    %cst_6 = arith.constant dense<0.000000e+00> : vector<264x128xf32>
    %27 = tpu.matmul %26, %25, %cst_6 {dimension_numbers = #tpu.dot_dimension_numbers<[1], [0], [0], [1], [0, 0, 1, 1], [], []>} : vector<264x128xf32>, vector<128x128xf32>, vector<264x128xf32> -> vector<264x128xf32>
    %28 = vector.extract_strided_slice %27 {offsets = [0, 0], sizes = [128, 128], strides = [1, 1]} : vector<264x128xf32> to vector<128x128xf32>
    %29 = vector.extract_strided_slice %27 {offsets = [128, 0], sizes = [128, 128], strides = [1, 1]} : vector<264x128xf32> to vector<128x128xf32>
    %30 = vector.extract_strided_slice %27 {offsets = [256, 0], sizes = [1, 128], strides = [1, 1]} : vector<264x128xf32> to vector<1x128xf32>
    %31 = arith.mulf %28, %28 : vector<128x128xf32>
    %32 = arith.subf %31, %29 : vector<128x128xf32>
    %cst_7 = arith.constant dense<0.000000e+00> : vector<128xf32>
    %33 = vector.multi_reduction <add>, %32, %cst_7 [0] : vector<128x128xf32> to vector<128xf32>
    %34 = vector.shape_cast %33 : vector<128xf32> to vector<1x128xf32>
    %cst_8 = arith.constant 5.000000e-01 : f32
    %35 = vector.broadcast %cst_8 : f32 to vector<1x128xf32>
    %36 = arith.mulf %35, %34 : vector<1x128xf32>
    %37 = arith.addf %30, %36 : vector<1x128xf32>
    %c0_9 = arith.constant 0 : index
    %38 = memref.load %arg3[%c0_9] : memref<1xf32, #tpu.memory_space<smem>>
    %39 = vector.broadcast %38 : f32 to vector<1x128xf32>
    %40 = arith.addf %37, %39 : vector<1x128xf32>
    %c0_10 = arith.constant 0 : index
    %c0_11 = arith.constant 0 : index
    %41 = vector.load %arg4[%c0_10, %c0_11] : memref<1x128xf32, #tpu.memory_space<vmem>>, vector<1x128xf32>
    tpu.vector_store %arg4[%c0_10, %c0_11], %40 {strides = array<i32>} : memref<1x128xf32, #tpu.memory_space<vmem>>, vector<1x128xf32>,
    return
  }
  func.func @transform_0(%arg0: i32) -> (i32, i32) {
    %c0_i32 = arith.constant 0 : i32
    %c0_i32_0 = arith.constant 0 : i32
    return %c0_i32, %arg0 : i32, i32
  }
  func.func @transform_1(%arg0: i32) -> (i32, i32) {
    %c0_i32 = arith.constant 0 : i32
    %c0_i32_0 = arith.constant 0 : i32
    %c0_i32_1 = arith.constant 0 : i32
    return %c0_i32, %c0_i32_0 : i32, i32
  }
  func.func @transform_2(%arg0: i32) -> i32 {
    %c0_i32 = arith.constant 0 : i32
    %c0_i32_0 = arith.constant 0 : i32
    return %c0_i32 : i32
  }
  func.func @transform_3(%arg0: i32) -> (i32, i32) {
    %c0_i32 = arith.constant 0 : i32
    %c0_i32_0 = arith.constant 0 : i32
    return %c0_i32, %arg0 : i32, i32
  }
}

</mosaic_0001>

<llo_original>
// kernel: fm_forward.1
$region0: #{fm_forward.1}
  #allocation0 [shape = 'u32[]', space=smem, size = 0x4, offset = 0x4, fixed_abs, tag = 'smem constant byte address 0x4 - core index']
  #allocation1 [shape = 'u32[144,128]{1,0:T(1,128)}', space=vmem, size = 0x12000, scoped, tag = 'internal scratch']
  #allocation2 [shape = 'f32[1]{0:T(128)S(6)}', space=smem, size = 0x200, scoped, tag = 'scoped memory for fm_forward.1']
  %s0 = inlined_call_operand.vmem [shape: s32[4,256], index: 0, kind: input, shape index: {}]
  %s1 = inlined_call_operand.hbm [shape: f32[264,128], index: 1, kind: input, shape index: {}]
  %s2 = inlined_call_operand.<no memory space> [shape: f32[1], index: 2, kind: input, shape index: {}]
  %s3 = inlined_call_operand.hbm [shape: f32[1,256], index: 3, kind: output, shape index: {}]
  %s4 = sld [smem:[#allocation0]]
  $region49: #{fm_forward.1} parent=0
    _
  %s6 = ssub.s32 1, %s4
  %s7 = scalar_select 0, %s6, %s4
  %8 = sst [smem:[#allocation2]] %s2
  $region1: #{fm_forward.1} parent=0
    #allocation3 [shape = 'u8[135168]{0}', space=vmem, size = 0x21000, scoped, tag = 'input window, operand 1, single buffered']
    #allocation4 [shape = 's32[2]{0}', space=sflag, size = 0x8, scoped, tag = 'scoped memory for fm_forward.1']
    #allocation5 [shape = 's32[2]{0}', space=sflag, size = 0x8, scoped, tag = 'scoped memory for fm_forward.1']
    #allocation6 [shape = 'u8[1024]{0}', space=vmem, size = 0x400, scoped, tag = 'output window, operand 0']
    %9 = vsyncpa [#allocation4], 0
    %10 = vsyncpa [#allocation5], 0
    %s11 = scalar_lea.sflag [#allocation5], 1
    %12 = vsyncpa %s11, 0
    loop: start=0, step=1, limit=4
    $region2: #{fm_forward.1} parent=1 // loop_pre_header
      _
    $region3: #{fm_forward.1} parent=1 // loop_header
      %s14 = sphi 0, %s18
      %p15 = scmp.ge.s32.totalorder %s14, 4
      %s24 = sphi 0, %s26
      %s27 = sphi 0, %s24
      %s28 = sphi 0, %s27
      %s44 = sphi 0, %s28
      %s48 = sphi 0, %s48
      %s50 = sphi 0, %s48
      %s51 = sphi 0, %s50
      %s65 = sphi 0, %s51
      %s69 = sphi 0, %s69
      %s71 = sphi 0, %s69
      %s72 = sphi 0, %s71
      %s86 = sphi 0, %s72
      %s92 = sphi 0, %s94
      %s95 = sphi 0, %s92
      %s96 = sphi 0, %s95
      %s112 = sphi 0, %s96
    $region4: #{fm_forward.1} parent=1 // loop_header_branch
      %17 = sbr.rel (%p15) target = $region8
    $region5: #{fm_forward.1} parent=1 // loop_body
      %s19 = ssub.s32 %s14, 1
      %s20 = ssub.s32 %s14, 2
      %s21 = sadd.s32 %s14, 1
      %s22 = ssub.s32 %s14, %s21
      %p23 = scmp.eq.s32.totalorder %s22, 0
      %s25 = sadd.s32 %s24, 1
      %s26 = scalar_select %p23, %s24, %s25
      %p29 = pneg %p23
      %p30 = scmp.eq.s32.totalorder %s14, 1
      %p31 = por %p29, %p30
      %p32 = scmp.ne.s32.totalorder %s24, %s27
      %p33 = scmp.eq.s32.totalorder %s14, 0
      %p34 = por %p32, %p33
      %p35 = scmp.ne.s32.totalorder %s24, %s27
      %p36 = scmp.eq.s32.totalorder %s19, 1
      %p37 = por %p35, %p36
      %p38 = scmp.ne.s32.totalorder %s27, %s28
      %p39 = scmp.eq.s32.totalorder %s19, 0
      %p40 = por %p38, %p39
      %p41 = scmp.ne.s32.totalorder %s27, %s28
      %p42 = scmp.eq.s32.totalorder %s20, 1
      %p43 = por %p41, %p42
      %p45 = scmp.ne.s32.totalorder %s28, %s44
      %p46 = scmp.eq.s32.totalorder %s20, 0
      %p47 = por %p45, %p46
      %s49 = sadd.s32 %s48, 1
      %p52 = scmp.eq.s32.totalorder %s14, 1
      %p53 = scmp.ne.s32.totalorder %s48, %s50
      %p54 = scmp.eq.s32.totalorder %s14, 0
      %p55 = por %p53, %p54
      %p56 = scmp.ne.s32.totalorder %s48, %s50
      %p57 = scmp.eq.s32.totalorder %s19, 1
      %p58 = por %p56, %p57
      %p59 = scmp.ne.s32.totalorder %s50, %s51
      %p60 = scmp.eq.s32.totalorder %s19, 0
      %p61 = por %p59, %p60
      %p62 = scmp.ne.s32.totalorder %s50, %s51
      %p63 = scmp.eq.s32.totalorder %s20, 1
      %p64 = por %p62, %p63
      %p66 = scmp.ne.s32.totalorder %s51, %s65
      %p67 = scmp.eq.s32.totalorder %s20, 0
      %p68 = por %p66, %p67
      %s70 = sadd.s32 %s69, 1
      %p73 = scmp.eq.s32.totalorder %s14, 1
      %p74 = scmp.ne.s32.totalorder %s69, %s71
      %p75 = scmp.eq.s32.totalorder %s14, 0
      %p76 = por %p74, %p75
      %p77 = scmp.ne.s32.totalorder %s69, %s71
      %p78 = scmp.eq.s32.totalorder %s19, 1
      %p79 = por %p77, %p78
      %p80 = scmp.ne.s32.totalorder %s71, %s72
      %p81 = scmp.eq.s32.totalorder %s19, 0
      %p82 = por %p80, %p81
      %p83 = scmp.ne.s32.totalorder %s71, %s72
      %p84 = scmp.eq.s32.totalorder %s20, 1
      %p85 = por %p83, %p84
      %p87 = scmp.ne.s32.totalorder %s72, %s86
      %p88 = scmp.eq.s32.totalorder %s20, 0
      %p89 = por %p87, %p88
      %s90 = ssub.s32 %s14, %s21
      %p91 = scmp.eq.s32.totalorder %s90, 0
      %s93 = sadd.s32 %s92, 1
      %s94 = scalar_select %p91, %s92, %s93
      %p97 = pneg %p91
      %p98 = scmp.eq.s32.totalorder %s14, 1
      %p99 = por %p97, %p98
      %p100 = scmp.ne.s32.totalorder %s92, %s95
      %p101 = scmp.eq.s32.totalorder %s14, 0
      %p102 = por %p100, %p101
      %p103 = scmp.ne.s32.totalorder %s92, %s95
      %p104 = scmp.eq.s32.totalorder %s19, 1
      %p105 = por %p103, %p104
      %p106 = scmp.ne.s32.totalorder %s95, %s96
      %p107 = scmp.eq.s32.totalorder %s19, 0
      %p108 = por %p106, %p107
      %p109 = scmp.ne.s32.totalorder %s95, %s96
      %p110 = scmp.eq.s32.totalorder %s20, 1
      %p111 = por %p109, %p110
      %p113 = scmp.ne.s32.totalorder %s96, %s112
      %p114 = scmp.eq.s32.totalorder %s20, 0
      %p115 = por %p113, %p114
      %p116 = scmp.le.s32.totalorder 1, %s14
      %p117 = scmp.lt.s32.totalorder %s14, 3
      %p118 = pnand %p116, %p117
      %p119 = pneg %p118
      // Predicated region
      $region9: #{fm_forward.1} parent=5 // pred_check
        _
      $region10: #{fm_forward.1} parent=5 // pred_check_branch
        %121 = sbr.rel (%p118) target = $region12
      $region11: #{fm_forward.1} parent=5 // pred_region
        %s122 = ssub.s32 %s14, 1
        // Predicated region
        $region13: #{fm_forward.1} parent=11 // pred_check
          %p123 = pneg %p61
        $region14: #{fm_forward.1} parent=11 // pred_check_branch
          %125 = sbr.rel (%p123) target = $region16
        $region15: #{fm_forward.1} parent=11 // pred_region
          %s127 = ssub.s32 4224, 4224
          %128 = vsyncadd [#allocation4], %s127
          %s129 = sshll.u32 [#allocation3], 4
          %s130 = int_to_ptr.vmem [resolvable:$true] %s129
          %135 = dma.hbm_to_vmem [thread:$0]  %s1, 4224, %s130, [#allocation4], 128, 128, 8
        $region16: #{fm_forward.1} parent=11 // pred_fallthru
          _
        // Predicated region
        $region17: #{fm_forward.1} parent=11 // pred_check
          %p136 = pneg %p82
        $region18: #{fm_forward.1} parent=11 // pred_check_branch
          %138 = sbr.rel (%p136) target = $region20
        $region19: #{fm_forward.1} parent=11 // pred_region
          _
        $region20: #{fm_forward.1} parent=11 // pred_fallthru
          _
      $region12: #{fm_forward.1} parent=5 // pred_fallthru
        _
      %p139 = scmp.lt.s32.totalorder %s14, 2
      // Predicated region
      $region21: #{fm_forward.1} parent=5 // pred_check
        %p140 = pneg %p139
      $region22: #{fm_forward.1} parent=5 // pred_check_branch
        %142 = sbr.rel (%p140) target = $region24
      $region23: #{fm_forward.1} parent=5 // pred_region
        // Predicated region
        $region25: #{fm_forward.1} parent=23 // pred_check
          %p143 = pneg %p34
        $region26: #{fm_forward.1} parent=23 // pred_check_branch
          %145 = sbr.rel (%p143) target = $region28
        $region27: #{fm_forward.1} parent=23 // pred_region
          %p146 = scmp.lt.s32.totalorder %s14, 1
          %s147 = scalar_select %p146, %s14, 1
          %s148 = smul.addr %s147, 4
          %s149 = scalar_lea.vmem %s0, %s148
        $region28: #{fm_forward.1} parent=23 // pred_fallthru
          _
      $region24: #{fm_forward.1} parent=5 // pred_fallthru
        _
      %p150 = scmp.le.s32.totalorder 1, %s14
      %p151 = scmp.lt.s32.totalorder %s14, 3
      %p152 = pnand %p150, %p151
      %p153 = pneg %p152
      // Predicated region
      $region29: #{fm_forward.1} parent=5 // pred_check
        _
      $region30: #{fm_forward.1} parent=5 // pred_check_branch
        %155 = sbr.rel (%p152) target = $region32
      $region31: #{fm_forward.1} parent=5 // pred_region
        %s156 = ssub.s32 %s14, 1
        // Predicated region
        $region33: #{fm_forward.1} parent=31 // pred_check
          %p157 = pneg %p61
        $region34: #{fm_forward.1} parent=31 // pred_check_branch
          %159 = sbr.rel (%p157) target = $region36
        $region35: #{fm_forward.1} parent=31 // pred_region
          %160 = dma.done [#allocation4], 4224
        $region36: #{fm_forward.1} parent=31 // pred_fallthru
          _
        %p161 = scmp.lt.s32.totalorder %s19, 1
        %s162 = scalar_select %p161, %s19, 1
        %s163 = smul.addr %s162, 4
        %s164 = scalar_lea.vmem %s0, %s163
        %p165 = pneg %p40
        %p166 = pneg %p37
        %p167 = pneg %p61
        %p168 = pneg %p58
        %p169 = pneg %p82
        %p170 = pneg %p79
        %p171 = pneg %p108
        %p172 = pneg %p105
        %s173 = sand.u32 %s95, 1
        %s174 = scalar_lea.sflag [#allocation5], %s173
        %s175 = sand.u32 %s95, 1
        %s176 = scalar_lea.vmem [#allocation6], %s175
        %p177 = scmp.lt.s32.totalorder %s19, 1
        %s178 = scalar_select %p177, %s19, 1
        %s179 = smul.addr %s178, 4
        %s180 = scalar_lea.vmem %s0, %s179
        %v181 = vlaneseq
        %v182 = vshrl.u32 %v181, 7
        %v183 = vadd.s32 %v182, 8
        %v184 = vadd.s32 %v182, 16
        %v185 = vadd.s32 %v182, 24
        %v186 = vadd.s32 %v182, 32
        %v187 = vadd.s32 %v182, 40
        %v188 = vadd.s32 %v182, 48
        %v189 = vadd.s32 %v182, 56
        %v190 = vadd.s32 %v182, 64
        %v191 = vadd.s32 %v182, 72
        %v192 = vadd.s32 %v182, 80
        %v193 = vadd.s32 %v182, 88
        %v194 = vadd.s32 %v182, 96
        %v195 = vadd.s32 %v182, 104
        %v196 = vadd.s32 %v182, 112
        %v197 = vadd.s32 %v182, 120
        %v198 = vld [vmem:[%s180] sm:$0x1]
        %v199 = vlaneseq
        %v200 = vshrl.u32 %v199, 7
        %v201 = vsub.s32 0, %v200
        %v202 = vrot.slane %v198, %v201
        %vm203 = vcmp.eq.s32.totalorder %v202, %v182
        %vm204 = vcmp.eq.s32.totalorder %v202, %v183
        %vm205 = vcmp.eq.s32.totalorder %v202, %v184
        %vm206 = vcmp.eq.s32.totalorder %v202, %v185
        %vm207 = vcmp.eq.s32.totalorder %v202, %v186
        %vm208 = vcmp.eq.s32.totalorder %v202, %v187
        %vm209 = vcmp.eq.s32.totalorder %v202, %v188
        %vm210 = vcmp.eq.s32.totalorder %v202, %v189
        %vm211 = vcmp.eq.s32.totalorder %v202, %v190
        %vm212 = vcmp.eq.s32.totalorder %v202, %v191
        %vm213 = vcmp.eq.s32.totalorder %v202, %v192
        %vm214 = vcmp.eq.s32.totalorder %v202, %v193
        %vm215 = vcmp.eq.s32.totalorder %v202, %v194
        %vm216 = vcmp.eq.s32.totalorder %v202, %v195
        %vm217 = vcmp.eq.s32.totalorder %v202, %v196
        %vm218 = vcmp.eq.s32.totalorder %v202, %v197
        %v219 = vsel %vm203, 1, 0
        %v220 = vsel %vm204, 1, 0
        %v221 = vsel %vm205, 1, 0
        %v222 = vsel %vm206, 1, 0
        %v223 = vsel %vm207, 1, 0
        %v224 = vsel %vm208, 1, 0
        %v225 = vsel %vm209, 1, 0
        %v226 = vsel %vm210, 1, 0
        %v227 = vsel %vm211, 1, 0
        %v228 = vsel %vm212, 1, 0
        %v229 = vsel %vm213, 1, 0
        %v230 = vsel %vm214, 1, 0
        %v231 = vsel %vm215, 1, 0
        %v232 = vsel %vm216, 1, 0
        %v233 = vsel %vm217, 1, 0
        %v234 = vsel %vm218, 1, 0
        %v235 = vcvt.s32.f32 %v219
        %v236 = vcvt.s32.f32 %v220
        %v237 = vcvt.s32.f32 %v221
        %v238 = vcvt.s32.f32 %v222
        %v239 = vcvt.s32.f32 %v223
        %v240 = vcvt.s32.f32 %v224
        %v241 = vcvt.s32.f32 %v225
        %v242 = vcvt.s32.f32 %v226
        %v243 = vcvt.s32.f32 %v227
        %v244 = vcvt.s32.f32 %v228
        %v245 = vcvt.s32.f32 %v229
        %v246 = vcvt.s32.f32 %v230
        %v247 = vcvt.s32.f32 %v231
        %v248 = vcvt.s32.f32 %v232
        %v249 = vcvt.s32.f32 %v233
        %v250 = vcvt.s32.f32 %v234
        %v251 = vadd.f32 %v235, 0.0
        %v252 = vadd.f32 %v236, 0.0
        %v253 = vadd.f32 %v237, 0.0
        %v254 = vadd.f32 %v238, 0.0
        %v255 = vadd.f32 %v239, 0.0
        %v256 = vadd.f32 %v240, 0.0
        %v257 = vadd.f32 %v241, 0.0
        %v258 = vadd.f32 %v242, 0.0
        %v259 = vadd.f32 %v243, 0.0
        %v260 = vadd.f32 %v244, 0.0
        %v261 = vadd.f32 %v245, 0.0
        %v262 = vadd.f32 %v246, 0.0
        %v263 = vadd.f32 %v247, 0.0
        %v264 = vadd.f32 %v248, 0.0
        %v265 = vadd.f32 %v249, 0.0
        %v266 = vadd.f32 %v250, 0.0
        %v267 = vld [vmem:[%s180 + $0x1] sm:$0x1]
        %v268 = vlaneseq
        %v269 = vshrl.u32 %v268, 7
        %v270 = vsub.s32 0, %v269
        %v271 = vrot.slane %v267, %v270
        %vm272 = vcmp.eq.s32.totalorder %v271, %v182
        %vm273 = vcmp.eq.s32.totalorder %v271, %v183
        %vm274 = vcmp.eq.s32.totalorder %v271, %v184
        %vm275 = vcmp.eq.s32.totalorder %v271, %v185
        %vm276 = vcmp.eq.s32.totalorder %v271, %v186
        %vm277 = vcmp.eq.s32.totalorder %v271, %v187
        %vm278 = vcmp.eq.s32.totalorder %v271, %v188
        %vm279 = vcmp.eq.s32.totalorder %v271, %v189
        %vm280 = vcmp.eq.s32.totalorder %v271, %v190
        %vm281 = vcmp.eq.s32.totalorder %v271, %v191
        %vm282 = vcmp.eq.s32.totalorder %v271, %v192
        %vm283 = vcmp.eq.s32.totalorder %v271, %v193
        %vm284 = vcmp.eq.s32.totalorder %v271, %v194
        %vm285 = vcmp.eq.s32.totalorder %v271, %v195
        %vm286 = vcmp.eq.s32.totalorder %v271, %v196
        %vm287 = vcmp.eq.s32.totalorder %v271, %v197
        %v288 = vsel %vm272, 1, 0
        %v289 = vsel %vm273, 1, 0
        %v290 = vsel %vm274, 1, 0
        %v291 = vsel %vm275, 1, 0
        %v292 = vsel %vm276, 1, 0
        %v293 = vsel %vm277, 1, 0
        %v294 = vsel %vm278, 1, 0
        %v295 = vsel %vm279, 1, 0
        %v296 = vsel %vm280, 1, 0
        %v297 = vsel %vm281, 1, 0
        %v298 = vsel %vm282, 1, 0
        %v299 = vsel %vm283, 1, 0
        %v300 = vsel %vm284, 1, 0
        %v301 = vsel %vm285, 1, 0
        %v302 = vsel %vm286, 1, 0
        %v303 = vsel %vm287, 1, 0
        %v304 = vcvt.s32.f32 %v288
        %v305 = vcvt.s32.f32 %v289
        %v306 = vcvt.s32.f32 %v290
        %v307 = vcvt.s32.f32 %v291
        %v308 = vcvt.s32.f32 %v292
        %v309 = vcvt.s32.f32 %v293
        %v310 = vcvt.s32.f32 %v294
        %v311 = vcvt.s32.f32 %v295
        %v312 = vcvt.s32.f32 %v296
        %v313 = vcvt.s32.f32 %v297
        %v314 = vcvt.s32.f32 %v298
        %v315 = vcvt.s32.f32 %v299
        %v316 = vcvt.s32.f32 %v300
        %v317 = vcvt.s32.f32 %v301
        %v318 = vcvt.s32.f32 %v302
        %v319 = vcvt.s32.f32 %v303
        %v320 = vadd.f32 %v251, %v304
        %v321 = vadd.f32 %v252, %v305
        %v322 = vadd.f32 %v253, %v306
        %v323 = vadd.f32 %v254, %v307
        %v324 = vadd.f32 %v255, %v308
        %v325 = vadd.f32 %v256, %v309
        %v326 = vadd.f32 %v257, %v310
        %v327 = vadd.f32 %v258, %v311
        %v328 = vadd.f32 %v259, %v312
        %v329 = vadd.f32 %v260, %v313
        %v330 = vadd.f32 %v261, %v314
        %v331 = vadd.f32 %v262, %v315
        %v332 = vadd.f32 %v263, %v316
        %v333 = vadd.f32 %v264, %v317
        %v334 = vadd.f32 %v265, %v318
        %v335 = vadd.f32 %v266, %v319
        %v336 = vld [vmem:[%s180 + $0x2] sm:$0x1]
        %v337 = vlaneseq
        %v338 = vshrl.u32 %v337, 7
        %v339 = vsub.s32 0, %v338
        %v340 = vrot.slane %v336, %v339
        %vm341 = vcmp.eq.s32.totalorder %v340, %v182
        %vm342 = vcmp.eq.s32.totalorder %v340, %v183
        %vm343 = vcmp.eq.s32.totalorder %v340, %v184
        %vm344 = vcmp.eq.s32.totalorder %v340, %v185
        %vm345 = vcmp.eq.s32.totalorder %v340, %v186
        %vm346 = vcmp.eq.s32.totalorder %v340, %v187
        %vm347 = vcmp.eq.s32.totalorder %v340, %v188
        %vm348 = vcmp.eq.s32.totalorder %v340, %v189
        %vm349 = vcmp.eq.s32.totalorder %v340, %v190
        %vm350 = vcmp.eq.s32.totalorder %v340, %v191
        %vm351 = vcmp.eq.s32.totalorder %v340, %v192
        %vm352 = vcmp.eq.s32.totalorder %v340, %v193
        %vm353 = vcmp.eq.s32.totalorder %v340, %v194
        %vm354 = vcmp.eq.s32.totalorder %v340, %v195
        %vm355 = vcmp.eq.s32.totalorder %v340, %v196
        %vm356 = vcmp.eq.s32.totalorder %v340, %v197
        %v357 = vsel %vm341, 1, 0
        %v358 = vsel %vm342, 1, 0
        %v359 = vsel %vm343, 1, 0
        %v360 = vsel %vm344, 1, 0
        %v361 = vsel %vm345, 1, 0
        %v362 = vsel %vm346, 1, 0
        %v363 = vsel %vm347, 1, 0
        %v364 = vsel %vm348, 1, 0
        %v365 = vsel %vm349, 1, 0
        %v366 = vsel %vm350, 1, 0
        %v367 = vsel %vm351, 1, 0
        %v368 = vsel %vm352, 1, 0
        %v369 = vsel %vm353, 1, 0
        %v370 = vsel %vm354, 1, 0
        %v371 = vsel %vm355, 1, 0
        %v372 = vsel %vm356, 1, 0
        %v373 = vcvt.s32.f32 %v357
        %v374 = vcvt.s32.f32 %v358
        %v375 = vcvt.s32.f32 %v359
        %v376 = vcvt.s32.f32 %v360
        %v377 = vcvt.s32.f32 %v361
        %v378 = vcvt.s32.f32 %v362
        %v379 = vcvt.s32.f32 %v363
        %v380 = vcvt.s32.f32 %v364
        %v381 = vcvt.s32.f32 %v365
        %v382 = vcvt.s32.f32 %v366
        %v383 = vcvt.s32.f32 %v367
        %v384 = vcvt.s32.f32 %v368
        %v385 = vcvt.s32.f32 %v369
        %v386 = vcvt.s32.f32 %v370
        %v387 = vcvt.s32.f32 %v371
        %v388 = vcvt.s32.f32 %v372
        %v389 = vadd.f32 %v320, %v373
        %v390 = vadd.f32 %v321, %v374
        %v391 = vadd.f32 %v322, %v375
        %v392 = vadd.f32 %v323, %v376
        %v393 = vadd.f32 %v324, %v377
        %v394 = vadd.f32 %v325, %v378
        %v395 = vadd.f32 %v326, %v379
        %v396 = vadd.f32 %v327, %v380
        %v397 = vadd.f32 %v328, %v381
        %v398 = vadd.f32 %v329, %v382
        %v399 = vadd.f32 %v330, %v383
        %v400 = vadd.f32 %v331, %v384
        %v401 = vadd.f32 %v332, %v385
        %v402 = vadd.f32 %v333, %v386
        %v403 = vadd.f32 %v334, %v387
        %v404 = vadd.f32 %v335, %v388
        %v405 = vld [vmem:[%s180 + $0x3] sm:$0x1]
        %v406 = vlaneseq
        %v407 = vshrl.u32 %v406, 7
        %v408 = vsub.s32 0, %v407
        %v409 = vrot.slane %v405, %v408
        %vm410 = vcmp.eq.s32.totalorder %v409, %v182
        %vm411 = vcmp.eq.s32.totalorder %v409, %v183
        %vm412 = vcmp.eq.s32.totalorder %v409, %v184
        %vm413 = vcmp.eq.s32.totalorder %v409, %v185
        %vm414 = vcmp.eq.s32.totalorder %v409, %v186
        %vm415 = vcmp.eq.s32.totalorder %v409, %v187
        %vm416 = vcmp.eq.s32.totalorder %v409, %v188
        %vm417 = vcmp.eq.s32.totalorder %v409, %v189
        %vm418 = vcmp.eq.s32.totalorder %v409, %v190
        %vm419 = vcmp.eq.s32.totalorder %v409, %v191
        %vm420 = vcmp.eq.s32.totalorder %v409, %v192
        %vm421 = vcmp.eq.s32.totalorder %v409, %v193
        %vm422 = vcmp.eq.s32.totalorder %v409, %v194
        %vm423 = vcmp.eq.s32.totalorder %v409, %v195
        %vm424 = vcmp.eq.s32.totalorder %v409, %v196
        %vm425 = vcmp.eq.s32.totalorder %v409, %v197
        %v426 = vsel %vm410, 1, 0
        %v427 = vsel %vm411, 1, 0
        %v428 = vsel %vm412, 1, 0
        %v429 = vsel %vm413, 1, 0
        %v430 = vsel %vm414, 1, 0
        %v431 = vsel %vm415, 1, 0
        %v432 = vsel %vm416, 1, 0
        %v433 = vsel %vm417, 1, 0
        %v434 = vsel %vm418, 1, 0
        %v435 = vsel %vm419, 1, 0
        %v436 = vsel %vm420, 1, 0
        %v437 = vsel %vm421, 1, 0
        %v438 = vsel %vm422, 1, 0
        %v439 = vsel %vm423, 1, 0
        %v440 = vsel %vm424, 1, 0
        %v441 = vsel %vm425, 1, 0
        %v442 = vcvt.s32.f32 %v426
        %v443 = vcvt.s32.f32 %v427
        %v444 = vcvt.s32.f32 %v428
        %v445 = vcvt.s32.f32 %v429
        %v446 = vcvt.s32.f32 %v430
        %v447 = vcvt.s32.f32 %v431
        %v448 = vcvt.s32.f32 %v432
        %v449 = vcvt.s32.f32 %v433
        %v450 = vcvt.s32.f32 %v434
        %v451 = vcvt.s32.f32 %v435
        %v452 = vcvt.s32.f32 %v436
        %v453 = vcvt.s32.f32 %v437
        %v454 = vcvt.s32.f32 %v438
        %v455 = vcvt.s32.f32 %v439
        %v456 = vcvt.s32.f32 %v440
        %v457 = vcvt.s32.f32 %v441
        %v458 = vadd.f32 %v389, %v442
        %v459 = vadd.f32 %v390, %v443
        %v460 = vadd.f32 %v391, %v444
        %v461 = vadd.f32 %v392, %v445
        %v462 = vadd.f32 %v393, %v446
        %v463 = vadd.f32 %v394, %v447
        %v464 = vadd.f32 %v395, %v448
        %v465 = vadd.f32 %v396, %v449
        %v466 = vadd.f32 %v397, %v450
        %v467 = vadd.f32 %v398, %v451
        %v468 = vadd.f32 %v399, %v452
        %v469 = vadd.f32 %v400, %v453
        %v470 = vadd.f32 %v401, %v454
        %v471 = vadd.f32 %v402, %v455
        %v472 = vadd.f32 %v403, %v456
        %v473 = vadd.f32 %v404, %v457
        %v474 = vld [vmem:[#allocation3] sm:$0xff]
        %v475 = vld [vmem:[#allocation3 + $0x8] sm:$0xff]
        %v476 = vld [vmem:[#allocation3 + $0x10] sm:$0xff]
        %v477 = vld [vmem:[#allocation3 + $0x18] sm:$0xff]
        %v478 = vld [vmem:[#allocation3 + $0x20] sm:$0xff]
        %v479 = vld [vmem:[#allocation3 + $0x28] sm:$0xff]
        %v480 = vld [vmem:[#allocation3 + $0x30] sm:$0xff]
        %v481 = vld [vmem:[#allocation3 + $0x38] sm:$0xff]
        %v482 = vld [vmem:[#allocation3 + $0x40] sm:$0xff]
        %v483 = vld [vmem:[#allocation3 + $0x48] sm:$0xff]
        %v484 = vld [vmem:[#allocation3 + $0x50] sm:$0xff]
        %v485 = vld [vmem:[#allocation3 + $0x58] sm:$0xff]
        %v486 = vld [vmem:[#allocation3 + $0x60] sm:$0xff]
        %v487 = vld [vmem:[#allocation3 + $0x68] sm:$0xff]
        %v488 = vld [vmem:[#allocation3 + $0x70] sm:$0xff]
        %v489 = vld [vmem:[#allocation3 + $0x78] sm:$0xff]
        %v490 = vld [vmem:[#allocation3 + $0x80] sm:$0xff]
        %v491 = vld [vmem:[#allocation3 + $0x88] sm:$0xff]
        %v492 = vld [vmem:[#allocation3 + $0x90] sm:$0xff]
        %v493 = vld [vmem:[#allocation3 + $0x98] sm:$0xff]
        %v494 = vld [vmem:[#allocation3 + $0xa0] sm:$0xff]
        %v495 = vld [vmem:[#allocation3 + $0xa8] sm:$0xff]
        %v496 = vld [vmem:[#allocation3 + $0xb0] sm:$0xff]
        %v497 = vld [vmem:[#allocation3 + $0xb8] sm:$0xff]
        %v498 = vld [vmem:[#allocation3 + $0xc0] sm:$0xff]
        %v499 = vld [vmem:[#allocation3 + $0xc8] sm:$0xff]
        %v500 = vld [vmem:[#allocation3 + $0xd0] sm:$0xff]
        %v501 = vld [vmem:[#allocation3 + $0xd8] sm:$0xff]
        %v502 = vld [vmem:[#allocation3 + $0xe0] sm:$0xff]
        %v503 = vld [vmem:[#allocation3 + $0xe8] sm:$0xff]
        %v504 = vld [vmem:[#allocation3 + $0xf0] sm:$0xff]
        %v505 = vld [vmem:[#allocation3 + $0xf8] sm:$0xff]
        %v506 = vld [vmem:[#allocation3 + $0x100] sm:$0xff]
        %507 = vmatprep.subr.mxu0 0.0
        %508 = vmatpush1.msra.mxu0 %v458
        %509 = vmatprep.subr.mxu0 0.0
        %510 = vmatpush1.msra.mxu0 %v459
        %511 = vmatprep.subr.mxu0 0.0
        %512 = vmatpush1.msra.mxu0 %v460
        %513 = vmatprep.subr.mxu0 0.0
        %514 = vmatpush1.msra.mxu0 %v461
        %515 = vmatprep.subr.mxu0 0.0
        %516 = vmatpush1.msra.mxu0 %v462
        %517 = vmatprep.subr.mxu0 0.0
        %518 = vmatpush1.msra.mxu0 %v463
        %519 = vmatprep.subr.mxu0 0.0
        %520 = vmatpush1.msra.mxu0 %v464
        %521 = vmatprep.subr.mxu0 0.0
        %522 = vmatpush1.msra.mxu0 %v465
        %523 = vmatprep.subr.mxu0 0.0
        %524 = vmatpush1.msra.mxu0 %v466
        %525 = vmatprep.subr.mxu0 0.0
        %526 = vmatpush1.msra.mxu0 %v467
        %527 = vmatprep.subr.mxu0 0.0
        %528 = vmatpush1.msra.mxu0 %v468
        %529 = vmatprep.subr.mxu0 0.0
        %530 = vmatpush1.msra.mxu0 %v469
        %531 = vmatprep.subr.mxu0 0.0
        %532 = vmatpush1.msra.mxu0 %v470
        %533 = vmatprep.subr.mxu0 0.0
        %534 = vmatpush1.msra.mxu0 %v471
        %535 = vmatprep.subr.mxu0 0.0
        %536 = vmatpush1.msra.mxu0 %v472
        %537 = vmatprep.subr.mxu0 0.0
        %538 = vmatpush1.msra.mxu0 %v473
        %539 = vmatprep.subr.mxu0 0.0
        %540 = vmatpush1.msra.mxu0 0.0
        %541 = vmatprep.subr.mxu0 0.0
        %542 = vmatpush1.msra.mxu0 0.0
        %543 = vmatprep.subr.mxu0 0.0
        %544 = vmatpush1.msra.mxu0 0.0
        %545 = vmatprep.subr.mxu0 0.0
        %546 = vmatpush1.msra.mxu0 0.0
        %547 = vmatprep.subr.mxu0 0.0
        %548 = vmatpush1.msra.mxu0 0.0
        %549 = vmatprep.subr.mxu0 0.0
        %550 = vmatpush1.msra.mxu0 0.0
        %551 = vmatprep.subr.mxu0 0.0
        %552 = vmatpush1.msra.mxu0 0.0
        %553 = vmatprep.subr.mxu0 0.0
        %554 = vmatpush1.msra.mxu0 0.0
        %555 = vmatprep.subr.mxu0 0.0
        %556 = vmatpush1.msra.mxu0 0.0
        %557 = vmatprep.subr.mxu0 0.0
        %558 = vmatpush1.msra.mxu0 0.0
        %559 = vmatprep.subr.mxu0 0.0
        %560 = vmatpush1.msra.mxu0 0.0
        %561 = vmatprep.subr.mxu0 0.0
        %562 = vmatpush1.msra.mxu0 0.0
        %563 = vmatprep.subr.mxu0 0.0
        %564 = vmatpush1.msra.mxu0 0.0
        %565 = vmatprep.subr.mxu0 0.0
        %566 = vmatpush1.msra.mxu0 0.0
        %567 = vmatprep.subr.mxu0 0.0
        %568 = vmatpush1.msra.mxu0 0.0
        %569 = vmatprep.subr.mxu0 0.0
        %570 = vmatpush1.msra.mxu0 0.0
        %571 = vmatprep.mubr.f32.mxu0 0.0
        %572 = vmatmul.mubr.f32.gmra.mrb[0].mxu0 %v474
        %v573 = vpop.f32.mrb[0].mxu0
        %v574 = vadd.f32 0.0, %v573
        %v575 = vpop.f32.mrb[0].mxu0
        %576 = vmatprep.mubr.f32.mxu0 0.0
        %577 = vmatmul.mubr.f32.gmra.mrb[0].mxu0 %v475
        %v578 = vpop.f32.mrb[0].mxu0
        %v579 = vadd.f32 0.0, %v578
        %v580 = vpop.f32.mrb[0].mxu0
        %581 = vmatprep.mubr.f32.mxu0 0.0
        %582 = vmatmul.mubr.f32.gmra.mrb[0].mxu0 %v476
        %v583 = vpop.f32.mrb[0].mxu0
        %v584 = vadd.f32 0.0, %v583
        %v585 = vpop.f32.mrb[0].mxu0
        %586 = vmatprep.mubr.f32.mxu0 0.0
        %587 = vmatmul.mubr.f32.gmra.mrb[0].mxu0 %v477
        %v588 = vpop.f32.mrb[0].mxu0
        %v589 = vadd.f32 0.0, %v588
        %v590 = vpop.f32.mrb[0].mxu0
        %591 = vmatprep.mubr.f32.mxu0 0.0
        %592 = vmatmul.mubr.f32.gmra.mrb[0].mxu0 %v478
        %v593 = vpop.f32.mrb[0].mxu0
        %v594 = vadd.f32 0.0, %v593
        %v595 = vpop.f32.mrb[0].mxu0
        %596 = vmatprep.mubr.f32.mxu0 0.0
        %597 = vmatmul.mubr.f32.gmra.mrb[0].mxu0 %v479
        %v598 = vpop.f32.mrb[0].mxu0
        %v599 = vadd.f32 0.0, %v598
        %v600 = vpop.f32.mrb[0].mxu0
        %601 = vmatprep.mubr.f32.mxu0 0.0
        %602 = vmatmul.mubr.f32.gmra.mrb[0].mxu0 %v480
        %v603 = vpop.f32.mrb[0].mxu0
        %v604 = vadd.f32 0.0, %v603
        %v605 = vpop.f32.mrb[0].mxu0
        %606 = vmatprep.mubr.f32.mxu0 0.0
        %607 = vmatmul.mubr.f32.gmra.mrb[0].mxu0 %v481
        %v608 = vpop.f32.mrb[0].mxu0
        %v609 = vadd.f32 0.0, %v608
        %v610 = vpop.f32.mrb[0].mxu0
        %611 = vmatprep.mubr.f32.mxu0 0.0
        %612 = vmatmul.mubr.f32.gmra.mrb[0].mxu0 %v482
        %v613 = vpop.f32.mrb[0].mxu0
        %v614 = vadd.f32 0.0, %v613
        %v615 = vpop.f32.mrb[0].mxu0
        %616 = vmatprep.mubr.f32.mxu0 0.0
        %617 = vmatmul.mubr.f32.gmra.mrb[0].mxu0 %v483
        %v618 = vpop.f32.mrb[0].mxu0
        %v619 = vadd.f32 0.0, %v618
        %v620 = vpop.f32.mrb[0].mxu0
        %621 = vmatprep.mubr.f32.mxu0 0.0
        %622 = vmatmul.mubr.f32.gmra.mrb[0].mxu0 %v484
        %v623 = vpop.f32.mrb[0].mxu0
        %v624 = vadd.f32 0.0, %v623
        %v625 = vpop.f32.mrb[0].mxu0
        %626 = vmatprep.mubr.f32.mxu0 0.0
        %627 = vmatmul.mubr.f32.gmra.mrb[0].mxu0 %v485
        %v628 = vpop.f32.mrb[0].mxu0
        %v629 = vadd.f32 0.0, %v628
        %v630 = vpop.f32.mrb[0].mxu0
        %631 = vmatprep.mubr.f32.mxu0 0.0
        %632 = vmatmul.mubr.f32.gmra.mrb[0].mxu0 %v486
        %v633 = vpop.f32.mrb[0].mxu0
        %v634 = vadd.f32 0.0, %v633
        %v635 = vpop.f32.mrb[0].mxu0
        %636 = vmatprep.mubr.f32.mxu0 0.0
        %637 = vmatmul.mubr.f32.gmra.mrb[0].mxu0 %v487
        %v638 = vpop.f32.mrb[0].mxu0
        %v639 = vadd.f32 0.0, %v638
        %v640 = vpop.f32.mrb[0].mxu0
        %641 = vmatprep.mubr.f32.mxu0 0.0
        %642 = vmatmul.mubr.f32.gmra.mrb[0].mxu0 %v488
        %v643 = vpop.f32.mrb[0].mxu0
        %v644 = vadd.f32 0.0, %v643
        %v645 = vpop.f32.mrb[0].mxu0
        %646 = vmatprep.mubr.f32.mxu0 0.0
        %647 = vmatmul.mubr.f32.gmra.mrb[0].mxu0 %v489
        %v648 = vpop.f32.mrb[0].mxu0
        %v649 = vadd.f32 0.0, %v648
        %v650 = vpop.f32.mrb[0].mxu0
        %651 = vmatprep.mubr.f32.mxu0 0.0
        %652 = vmatmul.mubr.f32.gmra.mrb[0].mxu0 %v490
        %v653 = vpop.f32.mrb[0].mxu0
        %v654 = vadd.f32 0.0, %v653
        %v655 = vpop.f32.mrb[0].mxu0
        %656 = vmatprep.mubr.f32.mxu0 0.0
        %657 = vmatmul.mubr.f32.gmra.mrb[0].mxu0 %v491
        %v658 = vpop.f32.mrb[0].mxu0
        %v659 = vadd.f32 0.0, %v658
        %v660 = vpop.f32.mrb[0].mxu0
        %661 = vmatprep.mubr.f32.mxu0 0.0
        %662 = vmatmul.mubr.f32.gmra.mrb[0].mxu0 %v492
        %v663 = vpop.f32.mrb[0].mxu0
        %v664 = vadd.f32 0.0, %v663
        %v665 = vpop.f32.mrb[0].mxu0
        %666 = vmatprep.mubr.f32.mxu0 0.0
        %667 = vmatmul.mubr.f32.gmra.mrb[0].mxu0 %v493
        %v668 = vpop.f32.mrb[0].mxu0
        %v669 = vadd.f32 0.0, %v668
        %v670 = vpop.f32.mrb[0].mxu0
        %671 = vmatprep.mubr.f32.mxu0 0.0
        %672 = vmatmul.mubr.f32.gmra.mrb[0].mxu0 %v494
        %v673 = vpop.f32.mrb[0].mxu0
        %v674 = vadd.f32 0.0, %v673
        %v675 = vpop.f32.mrb[0].mxu0
        %676 = vmatprep.mubr.f32.mxu0 0.0
        %677 = vmatmul.mubr.f32.gmra.mrb[0].mxu0 %v495
        %v678 = vpop.f32.mrb[0].mxu0
        %v679 = vadd.f32 0.0, %v678
        %v680 = vpop.f32.mrb[0].mxu0
        %681 = vmatprep.mubr.f32.mxu0 0.0
        %682 = vmatmul.mubr.f32.gmra.mrb[0].mxu0 %v496
        %v683 = vpop.f32.mrb[0].mxu0
        %v684 = vadd.f32 0.0, %v683
        %v685 = vpop.f32.mrb[0].mxu0
        %686 = vmatprep.mubr.f32.mxu0 0.0
        %687 = vmatmul.mubr.f32.gmra.mrb[0].mxu0 %v497
        %v688 = vpop.f32.mrb[0].mxu0
        %v689 = vadd.f32 0.0, %v688
        %v690 = vpop.f32.mrb[0].mxu0
        %691 = vmatprep.mubr.f32.mxu0 0.0
        %692 = vmatmul.mubr.f32.gmra.mrb[0].mxu0 %v498
        %v693 = vpop.f32.mrb[0].mxu0
        %v694 = vadd.f32 0.0, %v693
        %v695 = vpop.f32.mrb[0].mxu0
        %696 = vmatprep.mubr.f32.mxu0 0.0
        %697 = vmatmul.mubr.f32.gmra.mrb[0].mxu0 %v499
        %v698 = vpop.f32.mrb[0].mxu0
        %v699 = vadd.f32 0.0, %v698
        %v700 = vpop.f32.mrb[0].mxu0
        %701 = vmatprep.mubr.f32.mxu0 0.0
        %702 = vmatmul.mubr.f32.gmra.mrb[0].mxu0 %v500
        %v703 = vpop.f32.mrb[0].mxu0
        %v704 = vadd.f32 0.0, %v703
        %v705 = vpop.f32.mrb[0].mxu0
        %706 = vmatprep.mubr.f32.mxu0 0.0
        %707 = vmatmul.mubr.f32.gmra.mrb[0].mxu0 %v501
        %v708 = vpop.f32.mrb[0].mxu0
        %v709 = vadd.f32 0.0, %v708
        %v710 = vpop.f32.mrb[0].mxu0
        %711 = vmatprep.mubr.f32.mxu0 0.0
        %712 = vmatmul.mubr.f32.gmra.mrb[0].mxu0 %v502
        %v713 = vpop.f32.mrb[0].mxu0
        %v714 = vadd.f32 0.0, %v713
        %v715 = vpop.f32.mrb[0].mxu0
        %716 = vmatprep.mubr.f32.mxu0 0.0
        %717 = vmatmul.mubr.f32.gmra.mrb[0].mxu0 %v503
        %v718 = vpop.f32.mrb[0].mxu0
        %v719 = vadd.f32 0.0, %v718
        %v720 = vpop.f32.mrb[0].mxu0
        %721 = vmatprep.mubr.f32.mxu0 0.0
        %722 = vmatmul.mubr.f32.gmra.mrb[0].mxu0 %v504
        %v723 = vpop.f32.mrb[0].mxu0
        %v724 = vadd.f32 0.0, %v723
        %v725 = vpop.f32.mrb[0].mxu0
        %726 = vmatprep.mubr.f32.mxu0 0.0
        %727 = vmatmul.mubr.f32.gmra.mrb[0].mxu0 %v505
        %v728 = vpop.f32.mrb[0].mxu0
        %v729 = vadd.f32 0.0, %v728
        %v730 = vpop.f32.mrb[0].mxu0
        %731 = vmatprep.mubr.f32.mxu0 0.0
        %732 = vmatmul.mubr.f32.gmra.mrb[0].mxu0 %v506
        %v733 = vpop.f32.mrb[0].mxu0
        %v734 = vadd.f32 0.0, %v733
        %v735 = vpop.f32.mrb[0].mxu0
        %736 = vdwg.mxu0
        %v737 = vmul.f32 %v574, %v574
        %v738 = vmul.f32 %v579, %v579
        %v739 = vmul.f32 %v584, %v584
        %v740 = vmul.f32 %v589, %v589
        %v741 = vmul.f32 %v594, %v594
        %v742 = vmul.f32 %v599, %v599
        %v743 = vmul.f32 %v604, %v604
        %v744 = vmul.f32 %v609, %v609
        %v745 = vmul.f32 %v614, %v614
        %v746 = vmul.f32 %v619, %v619
        %v747 = vmul.f32 %v624, %v624
        %v748 = vmul.f32 %v629, %v629
        %v749 = vmul.f32 %v634, %v634
        %v750 = vmul.f32 %v639, %v639
        %v751 = vmul.f32 %v644, %v644
        %v752 = vmul.f32 %v649, %v649
        %v753 = vsub.f32 %v737, %v654
        %v754 = vsub.f32 %v738, %v659
        %v755 = vsub.f32 %v739, %v664
        %v756 = vsub.f32 %v740, %v669
        %v757 = vsub.f32 %v741, %v674
        %v758 = vsub.f32 %v742, %v679
        %v759 = vsub.f32 %v743, %v684
        %v760 = vsub.f32 %v744, %v689
        %v761 = vsub.f32 %v745, %v694
        %v762 = vsub.f32 %v746, %v699
        %v763 = vsub.f32 %v747, %v704
        %v764 = vsub.f32 %v748, %v709
        %v765 = vsub.f32 %v749, %v714
        %v766 = vsub.f32 %v750, %v719
        %v767 = vsub.f32 %v751, %v724
        %v768 = vsub.f32 %v752, %v729
        %v769 = vadd.f32 %v753, %v754
        %v770 = vadd.f32 %v769, %v755
        %v771 = vadd.f32 %v770, %v756
        %v772 = vadd.f32 %v771, %v757
        %v773 = vadd.f32 %v772, %v758
        %v774 = vadd.f32 %v773, %v759
        %v775 = vadd.f32 %v774, %v760
        %v776 = vadd.f32 %v775, %v761
        %v777 = vadd.f32 %v776, %v762
        %v778 = vadd.f32 %v777, %v763
        %v779 = vadd.f32 %v778, %v764
        %v780 = vadd.f32 %v779, %v765
        %v781 = vadd.f32 %v780, %v766
        %v782 = vadd.f32 %v781, %v767
        %v783 = vadd.f32 %v782, %v768
        %v784 = vrot.slane %v783, 4
        %v785 = vadd.f32 %v783, %v784
        %v786 = vrot.slane %v785, 2
        %v787 = vadd.f32 %v785, %v786
        %v788 = vrot.slane %v787, 1
        %v789 = vadd.f32 %v787, %v788
        %v790 = vmul.f32 %v789, 0.5
        %v791 = vadd.f32 %v734, %v790
        %s792 = sld [smem:[#allocation2]]
        %v793 = vstv %s792
        %v794 = vadd.f32 %v791, %v793
        %795 = vst [vmem:[%s176] sm:$0x1] %v794
        %s796 = sand.u32 %s95, 1
        %s797 = scalar_lea.sflag [#allocation5], %s796
        %s798 = sand.u32 %s95, 1
        %s799 = scalar_lea.vmem [#allocation6], %s798
        // Predicated region
        $region37: #{fm_forward.1} parent=31 // pred_check
          %p800 = pneg %p105
        $region38: #{fm_forward.1} parent=31 // pred_check_branch
          %802 = sbr.rel (%p800) target = $region40
        $region39: #{fm_forward.1} parent=31 // pred_region
          %s804 = ssub.s32 16, 16
          %805 = vsyncadd %s797, %s804
          %s806 = smul.addr %s19, 16
          %s807 = scalar_lea.hbm %s3, %s806
          %s809 = sshll.u32 %s799, 4
          %s810 = int_to_ptr.vmem [resolvable:$true] %s809
          %812 = dma.vmem_to_hbm [thread:$0]  %s810, 16, %s807, %s797
        $region40: #{fm_forward.1} parent=31 // pred_fallthru
          _
      $region32: #{fm_forward.1} parent=5 // pred_fallthru
        _
      %p813 = scmp.le.s32.totalorder 2, %s14
      // Predicated region
      $region41: #{fm_forward.1} parent=5 // pred_check
        %p814 = pneg %p813
      $region42: #{fm_forward.1} parent=5 // pred_check_branch
        %816 = sbr.rel (%p814) target = $region44
      $region43: #{fm_forward.1} parent=5 // pred_region
        %s817 = ssub.s32 %s14, 2
        // Predicated region
        $region45: #{fm_forward.1} parent=43 // pred_check
          %p818 = pneg %p111
        $region46: #{fm_forward.1} parent=43 // pred_check_branch
          %820 = sbr.rel (%p818) target = $region48
        $region47: #{fm_forward.1} parent=43 // pred_region
          %s821 = sand.u32 %s96, 1
          %s822 = scalar_lea.sflag [#allocation5], %s821
          %s823 = sand.u32 %s96, 1
          %s824 = scalar_lea.vmem [#allocation6], %s823
          %825 = dma.done %s822, 16
        $region48: #{fm_forward.1} parent=43 // pred_fallthru
          _
      $region44: #{fm_forward.1} parent=5 // pred_fallthru
        _
    $region6: #{fm_forward.1} parent=1 // loop_footer
      %s18 = sadd.s32 1, %s14
    $region7: #{fm_forward.1} parent=1 // loop_footer_branch
      %13 = sbr.rel target = $region3
    $region8: #{fm_forward.1} parent=1 // loop_exit
      _
    %826 = vsyncpa [#allocation4], 1
    %s827 = scalar_lea.sflag [#allocation4], 1
    %828 = vsyncpa %s827, 1
    %829 = vsyncpa [#allocation5], 1
    %s830 = scalar_lea.sflag [#allocation5], 1
    %831 = vsyncpa %s830, 1

</llo_original>
